<compile_context>
chip_gen: v6e
topology: v6e:2x2x1
jax: 0.10.0
libtpu: 0.0.40
codegen_flags: <defaults>
</compile_context>

<pallas_src>
import jax
import jax.numpy as jnp
from jax.experimental import pallas as pl
from jax.experimental.pallas import tpu as pltpu


def _round_up(x, m):
    return ((x + m - 1) // m) * m


# ----------------------------------------------------------------------------
# Pallas kernel: linear_bce head on the CLS activations
# ----------------------------------------------------------------------------
def bce_head_kernel(cls_ref, w_ref, b_ref, o_ref):
    # cls_ref: [Bm, H]  bf16 CLS activations (dropout p=0.1 in eval == identity)
    # w_ref:   [H, Lp]  bf16 linear_bce weight (transposed, lane-padded)
    # b_ref:   [1, Lp]  f32 bias (lane-padded)
    # o_ref:   [Bm, Lp] f32 logits
    logits = jnp.dot(cls_ref[...], w_ref[...], preferred_element_type=jnp.float32)
    o_ref[...] = logits + b_ref[...]


def linear_bce_head(cls_f32, w_bce, b_bce, *, block_m=256):
    """logits = dropout(cls) @ w_bce.T + b_bce   (eval-mode dropout == identity).

    cls_f32: [B, H] f32   CLS-token hidden states
    w_bce:   [L, H] f32   torch nn.Linear weight layout
    b_bce:   [L]    f32
    returns: [B, L] f32
    """
    B, H = cls_f32.shape
    L = w_bce.shape[0]

    # Lane-dense output: pad the label dim to a multiple of 128.
    Lp = _round_up(L, 128)
    # Batch tile: multiple of 8 sublanes, at most block_m rows per grid step.
    Bm = min(block_m, _round_up(B, 8))
    Bp = _round_up(B, Bm)

    # bf16 operands feed the MXU at full rate; accumulation stays f32.
    cls_p = jnp.pad(cls_f32, ((0, Bp - B), (0, 0))).astype(jnp.bfloat16)
    w_p = jnp.pad(w_bce.T, ((0, 0), (0, Lp - L))).astype(jnp.bfloat16)
    b_p = jnp.pad(b_bce.reshape(1, L), ((0, 0), (0, Lp - L))).astype(jnp.float32)

    out = pl.pallas_call(
        bce_head_kernel,
        out_shape=jax.ShapeDtypeStruct((Bp, Lp), jnp.float32),
        grid_spec=pl.GridSpec(
            grid=(Bp // Bm,),
            in_specs=[
                pl.BlockSpec((Bm, H), lambda i: (i, 0)),   # CLS rows for this tile
                pl.BlockSpec((H, Lp), lambda i: (0, 0)),   # weight: resident
                pl.BlockSpec((1, Lp), lambda i: (0, 0)),   # bias:   resident
            ],
            out_specs=pl.BlockSpec((Bm, Lp), lambda i: (i, 0)),
        ),
        compiler_params=pltpu.CompilerParams(
            dimension_semantics=("parallel",),
        ),
        cost_estimate=pl.CostEstimate(
            flops=2 * Bp * H * Lp,
            transcendentals=0,
            bytes_accessed=Bp * H * 2 + H * Lp * 2 + Lp * 4 + Bp * Lp * 4,
        ),
    )(cls_p, w_p, b_p)

    return out[:B, :L]


# ----------------------------------------------------------------------------
# Deterministic parameter construction (mirrors Baseline.__init__ shapes)
# ----------------------------------------------------------------------------
def xavier_uniform(key, shape):
    fan_out, fan_in = shape  # torch Linear weight is [out, in]
    limit = jnp.sqrt(6.0 / (fan_in + fan_out))
    return jax.random.uniform(key, shape, jnp.float32, -limit, limit)


def build_params(key, hidden_size, nb_labels, projection_dim):
    k1, k2, k3, k4 = jax.random.split(key, 4)
    return {
        # prototype (unused in forward): xavier-init [nb_labels, projection_dim]
        "prototype": xavier_uniform(k1, (nb_labels, projection_dim)),
        # projection head (unused in forward)
        "proj_w1": xavier_uniform(k2, (hidden_size, hidden_size)),
        "proj_w2": xavier_uniform(k3, (projection_dim, hidden_size)),
        # linear_bce: Linear(hidden_size, nb_labels), xavier weight, zero bias
        "bce_w": xavier_uniform(k4, (nb_labels, hidden_size)),
        "bce_b": jnp.zeros((nb_labels,), jnp.float32),
    }


# ----------------------------------------------------------------------------
# Stand-in backbone producing deterministic hidden states [B, S, H].
# TODO(synk): the real module uses a pretrained RoBERTa backbone
# (AutoModel.from_pretrained) — no Pallas equivalent without its checkpoint;
# replaced with a deterministic embedding-lookup stand-in (plain JAX glue).
# ----------------------------------------------------------------------------
def standin_backbone(key, input_ids, attention_mask, hidden_size):
    vocab = 100
    emb = jax.random.normal(key, (vocab, hidden_size), jnp.float32) * 0.02
    h = emb[input_ids]                                  # [B, S, H]
    h = h * attention_mask[..., None].astype(jnp.float32)
    return h


if __name__ == "__main__":
    # Small shapes consistent with the module's forward.
    B, S, H = 2, 8, 32          # batch, sequence length, hidden size
    nb_labels = 4
    projection_dim = 128

    key = jax.random.PRNGKey(0)
    k_params, k_backbone, k_ids, k_bias = jax.random.split(key, 4)

    params = build_params(k_params, H, nb_labels, projection_dim)
    # The module initializes linear_bce.bias to zero; use a nonzero bias in the
    # self-test so the bias-add path is actually exercised (any trained bias is
    # a valid forward input).
    b_bce = 0.1 * jax.random.normal(k_bias, (nb_labels,), jnp.float32)

    input_ids = jax.random.randint(k_ids, (B, S), 0, 100)
    attention_mask = jnp.ones((B, S), jnp.int32)

    # "Backbone" hidden states (glue, outside the kernel).
    hidden_states = standin_backbone(k_backbone, input_ids, attention_mask, H)

    # CLS selection in the wrapper: the kernel only ever sees [B, H], so no
    # [B, S, H] DMA and no VMEM blow-up at production shapes.
    cls = hidden_states[:, 0, :]

    # Kernel: dropout(eval=identity) + linear_bce.
    logits = linear_bce_head(cls, params["bce_w"], b_bce)
    logits = jax.block_until_ready(logits)

    # Pure-JAX reference using the same bf16-rounded operands, f32 accumulate.
    cls_bf = cls.astype(jnp.bfloat16).astype(jnp.float32)
    w_bf = params["bce_w"].T.astype(jnp.bfloat16).astype(jnp.float32)
    ref = jnp.dot(cls_bf, w_bf, precision=jax.lax.Precision.HIGHEST) + b_bce[None, :]

    assert logits.shape == (B, nb_labels)
    assert jnp.allclose(logits, ref, atol=1e-2, rtol=1e-2), float(
        jnp.max(jnp.abs(logits - ref)))

    print("KERNEL_OK")
</pallas_src>

<mosaic_0001>
module attributes {stable_mosaic.version = 11 : i64} {
  func.func @bce_head_kernel(%arg0: i32, %arg1: memref<8x32xbf16, #tpu.memory_space<vmem>>, %arg2: memref<32x128xbf16, #tpu.memory_space<vmem>>, %arg3: memref<1x128xf32, #tpu.memory_space<vmem>>, %arg4: memref<8x128xf32, #tpu.memory_space<vmem>>) attributes {dimension_semantics = [#tpu.dimension_semantics<parallel>], iteration_bounds = array<i64: 1>, scalar_prefetch = 0 : i64, scratch_operands = 0 : i64, tpu.core_type = #tpu.core_type<tc>, window_params = [{transform_indices = @transform_0, window_bounds = array<i64: 8, 32>}, {pipeline_mode = #tpu.pipeline_mode<synchronous>, transform_indices = @transform_1, window_bounds = array<i64: 32, 128>}, {pipeline_mode = #tpu.pipeline_mode<synchronous>, transform_indices = @transform_2, window_bounds = array<i64: 1, 128>}, {transform_indices = @transform_3, window_bounds = array<i64: 8, 128>}]} {
    %c0 = arith.constant 0 : index
    %c0_0 = arith.constant 0 : index
    %0 = vector.load %arg1[%c0, %c0_0] : memref<8x32xbf16, #tpu.memory_space<vmem>>, vector<8x32xbf16>
    %c0_1 = arith.constant 0 : index
    %c0_2 = arith.constant 0 : index
    %1 = vector.load %arg2[%c0_1, %c0_2] : memref<32x128xbf16, #tpu.memory_space<vmem>>, vector<32x128xbf16>
    %cst = arith.constant dense<0.000000e+00> : vector<8x128xf32>
    %2 = tpu.matmul %0, %1, %cst {dimension_numbers = #tpu.dot_dimension_numbers<[1], [0], [0], [1], [0, 0, 1, 1], [], []>} : vector<8x32xbf16>, vector<32x128xbf16>, vector<8x128xf32> -> vector<8x128xf32>
    %c0_3 = arith.constant 0 : index
    %c0_4 = arith.constant 0 : index
    %3 = vector.load %arg3[%c0_3, %c0_4] : memref<1x128xf32, #tpu.memory_space<vmem>>, vector<1x128xf32>
    %4 = vector.broadcast %3 : vector<1x128xf32> to vector<8x128xf32>
    %5 = arith.addf %2, %4 : vector<8x128xf32>
    %c0_5 = arith.constant 0 : index
    %c0_6 = arith.constant 0 : index
    %6 = vector.load %arg4[%c0_5, %c0_6] : memref<8x128xf32, #tpu.memory_space<vmem>>, vector<8x128xf32>
    tpu.vector_store %arg4[%c0_5, %c0_6], %5 {strides = array<i32>} : memref<8x128xf32, #tpu.memory_space<vmem>>, vector<8x128xf32>,
    return
  }
  func.func @transform_0(%arg0: i32) -> (i32, i32) {
    %c0_i32 = arith.constant 0 : i32
    %c0_i32_0 = arith.constant 0 : i32
    return %arg0, %c0_i32 : i32, i32
  }
  func.func @transform_1(%arg0: i32) -> (i32, i32) {
    %c0_i32 = arith.constant 0 : i32
    %c0_i32_0 = arith.constant 0 : i32
    %c0_i32_1 = arith.constant 0 : i32
    return %c0_i32, %c0_i32_0 : i32, i32
  }
  func.func @transform_2(%arg0: i32) -> (i32, i32) {
    %c0_i32 = arith.constant 0 : i32
    %c0_i32_0 = arith.constant 0 : i32
    %c0_i32_1 = arith.constant 0 : i32
    return %c0_i32, %c0_i32_0 : i32, i32
  }
  func.func @transform_3(%arg0: i32) -> (i32, i32) {
    %c0_i32 = arith.constant 0 : i32
    %c0_i32_0 = arith.constant 0 : i32
    return %arg0, %c0_i32 : i32, i32
  }
}

</mosaic_0001>

<llo_original>
// kernel: tpu_custom_call.1
$region0: #{tpu_custom_call.1}
  #allocation0 [shape = 'u32[]', space=smem, size = 0x4, offset = 0x4, fixed_abs, tag = 'smem constant byte address 0x4 - core index']
  #allocation1 [shape = 'u32[144,128]{1,0:T(1,128)}', space=vmem, size = 0x12000, scoped, tag = 'internal scratch']
  %s0 = inlined_call_operand.hbm [shape: bf16[8,32], index: 0, kind: input, shape index: {}]
  %s1 = inlined_call_operand.hbm [shape: bf16[32,128], index: 1, kind: input, shape index: {}]
  %s2 = inlined_call_operand.vmem [shape: f32[1,128], index: 2, kind: input, shape index: {}]
  %s3 = inlined_call_operand.hbm [shape: f32[8,128], index: 3, kind: output, shape index: {}]
  %s4 = sld [smem:[#allocation0]]
  $region30: #{tpu_custom_call.1} parent=0
    _
  %s6 = ssub.s32 1, %s4
  %s7 = scalar_select 0, %s6, %s4
  $region1: #{tpu_custom_call.1} parent=0
    #allocation2 [shape = 'u8[2048]{0}', space=vmem, size = 0x800, scoped, tag = 'input window, operand 0, single buffered']
    #allocation3 [shape = 's32[1]{0}', space=sflag, size = 0x4, scoped, tag = 'scoped memory for tpu_custom_call.1']
    #allocation4 [shape = 's32[1]{0}', space=sflag, size = 0x4, scoped, tag = 'scoped memory for tpu_custom_call.1']
    #allocation5 [shape = 'u8[8192]{0}', space=vmem, size = 0x2000, scoped, tag = 'input window, operand 1, single buffered']
    #allocation6 [shape = 's32[1]{0}', space=sflag, size = 0x4, scoped, tag = 'scoped memory for tpu_custom_call.1']
    #allocation7 [shape = 'u8[4096]{0}', space=vmem, size = 0x1000, scoped, tag = 'output window, operand 0, single buffered']
    %8 = vsyncpa [#allocation3], 0
    %9 = vsyncpa [#allocation6], 0
    %10 = vsyncpa [#allocation4], 0
    // Predicated region
    $region2: #{tpu_custom_call.1} parent=1 // pred_check
      _
    $region3: #{tpu_custom_call.1} parent=1 // pred_check_branch
      %12 = sbr.rel (0) target = $region5
    $region4: #{tpu_custom_call.1} parent=1 // pred_region
      %s14 = ssub.s32 64, 64
      %15 = vsyncadd [#allocation3], %s14
      %s17 = sshll.u32 [#allocation2], 4
      %s18 = int_to_ptr.vmem [resolvable:$true] %s17
      %20 = dma.hbm_to_vmem [thread:$0]  %s0, 64, %s18, [#allocation3]
    $region5: #{tpu_custom_call.1} parent=1 // pred_fallthru
      _
    // Predicated region
    $region6: #{tpu_custom_call.1} parent=1 // pred_check
      _
    $region7: #{tpu_custom_call.1} parent=1 // pred_check_branch
      %22 = sbr.rel (0) target = $region9
    $region8: #{tpu_custom_call.1} parent=1 // pred_region
      %s24 = ssub.s32 256, 256
      %25 = vsyncadd [#allocation6], %s24
      %s26 = sshll.u32 [#allocation5], 4
      %s27 = int_to_ptr.vmem [resolvable:$true] %s26
      %32 = dma.hbm_to_vmem [thread:$0]  %s1, 256, %s27, [#allocation6], 64, 64, 4
    $region9: #{tpu_custom_call.1} parent=1 // pred_fallthru
      _
    // Predicated region
    $region10: #{tpu_custom_call.1} parent=1 // pred_check
      _
    $region11: #{tpu_custom_call.1} parent=1 // pred_check_branch
      %34 = sbr.rel (0) target = $region13
    $region12: #{tpu_custom_call.1} parent=1 // pred_region
      _
    $region13: #{tpu_custom_call.1} parent=1 // pred_fallthru
      _
    // Predicated region
    $region14: #{tpu_custom_call.1} parent=1 // pred_check
      _
    $region15: #{tpu_custom_call.1} parent=1 // pred_check_branch
      %36 = sbr.rel (0) target = $region17
    $region16: #{tpu_custom_call.1} parent=1 // pred_region
      %37 = dma.done [#allocation3], 64
    $region17: #{tpu_custom_call.1} parent=1 // pred_fallthru
      _
    // Predicated region
    $region18: #{tpu_custom_call.1} parent=1 // pred_check
      _
    $region19: #{tpu_custom_call.1} parent=1 // pred_check_branch
      %39 = sbr.rel (0) target = $region21
    $region20: #{tpu_custom_call.1} parent=1 // pred_region
      %40 = dma.done [#allocation6], 256
    $region21: #{tpu_custom_call.1} parent=1 // pred_fallthru
      _
    %v42 = vld [vmem:[#allocation2] sm:$0xf]
    %v43 = vld [vmem:[#allocation5] sm:$0xf]
    %v44 = vld [vmem:[#allocation5 + $0x4] sm:$0xf]
    %v45 = vld [vmem:[#allocation5 + $0x8] sm:$0xf]
    %v46 = vld [vmem:[#allocation5 + $0xc] sm:$0xf]
    %v47 = vld [vmem:[%s2] sm:$0x1]
    %v49 = vlaneseq
    %v50 = vshrl.u32 %v49, 7
    %v51 = vsub.s32 0, %v50
    %v52 = vrot.slane %v47, %v51
    %v58 = vunpack.c.l.b16 %v43
    %v59 = vunpack.c.l.b16 %v44
    %v60 = vunpack.c.l.b16 %v45
    %v61 = vunpack.c.l.b16 %v46
    %v62 = vpack.c.b16 %v59, %v58
    %v63 = vpack.c.b16 %v61, %v60
    %vm66 = vcmask 261120
    %v68 = vsel %vm66, %v42, 0
    %70 = vmatprep.subr.bf16.mxu0 0
    %71 = vmatpush1.bf16.msra.mxu0 0
    %72 = vmatprep.subr.bf16.mxu0 0
    %73 = vmatpush1.bf16.msra.mxu0 0
    %74 = vmatprep.subr.bf16.mxu0 0
    %75 = vmatpush1.bf16.msra.mxu0 0
    %76 = vmatprep.subr.bf16.mxu0 0
    %77 = vmatpush1.bf16.msra.mxu0 0
    %78 = vmatprep.subr.bf16.mxu0 0
    %79 = vmatpush1.bf16.msra.mxu0 0
    %80 = vmatprep.subr.bf16.mxu0 0
    %81 = vmatpush1.bf16.msra.mxu0 0
    %82 = vmatprep.subr.bf16.mxu0 0
    %83 = vmatpush1.bf16.msra.mxu0 %v63
    %84 = vmatprep.subr.bf16.mxu0 0
    %85 = vmatpush1.bf16.msra.mxu0 %v62
    %86 = vmatprep.subr.bf16.mxu0 0
    %87 = vmatpush2.bf16.msra.mxu0 0
    %88 = vmatprep.subr.bf16.mxu0 0
    %89 = vmatpush2.bf16.msra.mxu0 0
    %90 = vmatprep.subr.bf16.mxu0 0
    %91 = vmatpush2.bf16.msra.mxu0 0
    %92 = vmatprep.subr.bf16.mxu0 0
    %93 = vmatpush2.bf16.msra.mxu0 0
    %94 = vmatprep.subr.bf16.mxu0 0
    %95 = vmatpush2.bf16.msra.mxu0 0
    %96 = vmatprep.subr.bf16.mxu0 0
    %97 = vmatpush2.bf16.msra.mxu0 0
    %98 = vmatprep.subr.bf16.mxu0 0
    %99 = vmatpush2.bf16.msra.mxu0 0
    %100 = vmatprep.subr.bf16.mxu0 0
    %101 = vmatpush2.bf16.msra.mxu0 0
    %102 = vmatprep.mubr.bf16.mxu0 0
    %103 = vmatmul.mubr.bf16.gmra.mxu0 %v68
    %v104 = vpop.f32.mrf.mxu0
    %v105 = vadd.f32 %v52, %v104
    %v106 = vpop.f32.mrf.mxu0
    %v107 = vpop.f32.mrf.mxu0
    %v108 = vpop.f32.mrf.mxu0
    %109 = vdwg.mxu0
    %110 = vst [vmem:[#allocation7] sm:$0xff] %v105
    // Predicated region
    $region22: #{tpu_custom_call.1} parent=1 // pred_check
      _
    $region23: #{tpu_custom_call.1} parent=1 // pred_check_branch
      %112 = sbr.rel (0) target = $region25
    $region24: #{tpu_custom_call.1} parent=1 // pred_region
      %s114 = ssub.s32 128, 128
      %115 = vsyncadd [#allocation4], %s114
      %s117 = sshll.u32 [#allocation7], 4
      %s118 = int_to_ptr.vmem [resolvable:$true] %s117
      %120 = dma.vmem_to_hbm [thread:$0]  %s118, 128, %s3, [#allocation4]
    $region25: #{tpu_custom_call.1} parent=1 // pred_fallthru
      _
    // Predicated region
    $region26: #{tpu_custom_call.1} parent=1 // pred_check
      _
    $region27: #{tpu_custom_call.1} parent=1 // pred_check_branch
      %122 = sbr.rel (0) target = $region29
    $region28: #{tpu_custom_call.1} parent=1 // pred_region
      %123 = dma.done [#allocation4], 128
    $region29: #{tpu_custom_call.1} parent=1 // pred_fallthru
      _
    %124 = vsyncpa [#allocation3], 1
    %125 = vsyncpa [#allocation6], 1
    %126 = vsyncpa [#allocation4], 1

</llo_original>
